<compile_context>
chip_gen: v5e
topology: v5e:2x2
jax: 0.10.0
libtpu: 0.0.40
codegen_flags: <defaults>
</compile_context>

<pallas_src>
import jax
import jax.numpy as jnp
from jax.experimental import pallas as pl
from jax.experimental.pallas import tpu as pltpu


def _make_kernel(num_interaction_layers):
    """Fused kernel: block-diag embed matmul + relu, then MLP stack."""

    def kernel(*refs):
        # refs layout: x_cat, w_embed, b_embed, (wt_i, b_i)*L, out
        x_ref = refs[0]
        we_ref, be_ref = refs[1], refs[2]
        layer_refs = refs[3:3 + 2 * num_interaction_layers]
        out_ref = refs[-1]

        # Fused embed layers: one block-diagonal matmul (bf16 ops, f32 acc),
        # bias + ReLU in f32 on the VPU (free under the MXU-bound chain).
        h = jnp.dot(x_ref[...], we_ref[...],
                    preferred_element_type=jnp.float32)
        h = jnp.maximum(h + be_ref[...], 0.0)

        # Interaction MLP: Linear + ReLU per layer (static unroll; the last
        # layer's weight/bias are lane-padded to 128 in the wrapper so the
        # final store is lane-dense).
        for li in range(num_interaction_layers):
            wt_ref = layer_refs[2 * li]
            b_ref = layer_refs[2 * li + 1]
            h = jnp.dot(h.astype(wt_ref.dtype), wt_ref[...],
                        preferred_element_type=jnp.float32)
            h = jnp.maximum(h + b_ref[...], 0.0)

        out_ref[...] = h  # already f32

    return kernel


def bi_interaction_forward(in1, in2, params, *, batch_tile=128):
    """
    in1: [B, in1_features]  in2: [B, in2_features]
    params: dict with
      'w1': [embed, in1], 'b1': [embed],
      'w2': [embed, in2], 'b2': [embed],
      'layers': list of (w: [out_i, in_i], b: [out_i]).
    Returns [B, out_features] in float32.
    """
    B = in1.shape[0]
    in1_f, in2_f = in1.shape[1], in2.shape[1]
    embed = params["w1"].shape[0]
    out_features = params["layers"][-1][0].shape[0]
    num_layers = len(params["layers"])

    # --- batch padding / tiling (128-aligned tile fills the MXU M dim) ---
    nb = pl.cdiv(B, batch_tile)
    B_pad = nb * batch_tile

    # Concatenate inputs once in the wrapper (removes in-kernel lane concat).
    x = jnp.concatenate([in1, in2], axis=-1)
    if B_pad != B:
        x = jnp.pad(x, ((0, B_pad - B), (0, 0)))
    x = x.astype(jnp.bfloat16)

    # Block-diagonal embed weight [in1+in2, 2*embed] and fused bias.
    w_embed = jnp.zeros((in1_f + in2_f, 2 * embed), jnp.float32)
    w_embed = w_embed.at[:in1_f, :embed].set(params["w1"].T)
    w_embed = w_embed.at[in1_f:, embed:].set(params["w2"].T)
    w_embed = w_embed.astype(jnp.bfloat16)
    b_embed = jnp.concatenate([params["b1"], params["b2"]]).reshape(1, -1)
    b_embed = b_embed.astype(jnp.float32)

    # Interaction layers: pre-transpose to [in, out]; zero-pad the LAST
    # layer's output dim to a multiple of 128 for lane-dense output stores.
    out_pad = max(128, pl.cdiv(out_features, 128) * 128)
    layer_ops = []
    for li, (w, b) in enumerate(params["layers"]):
        wt = w.T.astype(jnp.float32)
        bb = b.reshape(1, -1).astype(jnp.float32)
        if li == num_layers - 1 and wt.shape[1] != out_pad:
            wt = jnp.pad(wt, ((0, 0), (0, out_pad - wt.shape[1])))
            bb = jnp.pad(bb, ((0, 0), (0, out_pad - bb.shape[1])))
        layer_ops.append(wt.astype(jnp.bfloat16))
        layer_ops.append(bb)  # biases stay f32

    # BlockSpecs: tile the batch axis of activations / output; weights and
    # biases are loaded whole and reused across every grid step.
    def full_spec(arr):
        return pl.BlockSpec(arr.shape, lambda i: (0,) * arr.ndim)

    in_specs = [
        pl.BlockSpec((batch_tile, x.shape[1]), lambda i: (i, 0)),
        full_spec(w_embed), full_spec(b_embed),
    ] + [full_spec(a) for a in layer_ops]

    out_spec = pl.BlockSpec((batch_tile, out_pad), lambda i: (i, 0))

    kernel = _make_kernel(num_layers)

    out = pl.pallas_call(
        kernel,
        out_shape=jax.ShapeDtypeStruct((B_pad, out_pad), jnp.float32),
        grid=(nb,),
        in_specs=in_specs,
        out_specs=out_spec,
        compiler_params=pltpu.CompilerParams(
            dimension_semantics=("parallel",)),
    )(x, w_embed, b_embed, *layer_ops)

    # Strip batch / lane padding outside the kernel.
    return out[:B, :out_features]


def _torch_linear_init(key, out_f, in_f):
    """Deterministic init mimicking nn.Linear.reset_parameters()."""
    kw, kb = jax.random.split(key)
    bound = 1.0 / jnp.sqrt(jnp.float32(in_f))
    w = jax.random.uniform(kw, (out_f, in_f), jnp.float32, -bound, bound)
    b = jax.random.uniform(kb, (out_f,), jnp.float32, -bound, bound)
    return w, b


def _reference_forward_f32(in1, in2, params):
    relu = lambda x: jnp.maximum(x, 0.0)
    e1 = relu(in1 @ params["w1"].T + params["b1"])
    e2 = relu(in2 @ params["w2"].T + params["b2"])
    h = jnp.concatenate([e1, e2], axis=-1)
    for (w, b) in params["layers"]:
        h = relu(h @ w.T + b)
    return h


def _reference_forward_bf16(in1, in2, params):
    """Same math as the kernel: bf16 matmul operands, f32 accumulation."""
    bf = lambda x: x.astype(jnp.bfloat16).astype(jnp.float32)
    relu = lambda x: jnp.maximum(x, 0.0)
    e1 = relu(bf(in1) @ bf(params["w1"]).T + params["b1"])
    e2 = relu(bf(in2) @ bf(params["w2"]).T + params["b2"])
    h = jnp.concatenate([e1, e2], axis=-1)
    for (w, b) in params["layers"]:
        h = relu(bf(h) @ bf(w).T + b)
    return h


if __name__ == "__main__":
    # Small, module-consistent shapes; batch sized so the grid has 2 parallel
    # steps of 128 rows each (fills the MXU, shards over v7x's 2 TCs).
    batch = 256
    in1_features = 20
    in2_features = 12
    embed_size = 32
    intermediate_size = [64, 48]
    out_features = 16

    key = jax.random.PRNGKey(0)
    k_in1, k_in2, k_e1, k_e2, *k_layers = jax.random.split(
        key, 4 + len(intermediate_size) + 1)

    in1 = jax.random.normal(k_in1, (batch, in1_features), jnp.float32)
    in2 = jax.random.normal(k_in2, (batch, in2_features), jnp.float32)

    w1, b1 = _torch_linear_init(k_e1, embed_size, in1_features)
    w2, b2 = _torch_linear_init(k_e2, embed_size, in2_features)

    # Interaction MLP: (2*embed -> intermediate[0] -> ... -> out_features)
    layer_dims = [2 * embed_size] + list(intermediate_size) + [out_features]
    layers = []
    for li in range(len(layer_dims) - 1):
        w, b = _torch_linear_init(k_layers[li], layer_dims[li + 1], layer_dims[li])
        layers.append((w, b))

    params = {"w1": w1, "b1": b1, "w2": w2, "b2": b2, "layers": layers}

    out = bi_interaction_forward(in1, in2, params, batch_tile=128)
    out = jax.block_until_ready(out)
    assert out.shape == (batch, out_features)

    # Tight check against a reference using identical bf16-operand math.
    ref_bf16 = _reference_forward_bf16(in1, in2, params)
    assert jnp.allclose(out, ref_bf16, atol=2e-3, rtol=2e-3)

    # Loose semantic check against the pure-f32 PyTorch-equivalent forward
    # (bf16 MXU operands introduce ~1% error; f32 accumulation retained).
    ref_f32 = _reference_forward_f32(in1, in2, params)
    assert jnp.allclose(out, ref_f32, atol=1e-1, rtol=1e-1)

    print("KERNEL_OK")
</pallas_src>

<mosaic_0001>
module attributes {stable_mosaic.version = 11 : i64} {
  func.func @kernel(%arg0: i32, %arg1: memref<128x32xbf16, #tpu.memory_space<vmem>>, %arg2: memref<32x64xbf16, #tpu.memory_space<vmem>>, %arg3: memref<1x64xf32, #tpu.memory_space<vmem>>, %arg4: memref<64x64xbf16, #tpu.memory_space<vmem>>, %arg5: memref<1x64xf32, #tpu.memory_space<vmem>>, %arg6: memref<64x48xbf16, #tpu.memory_space<vmem>>, %arg7: memref<1x48xf32, #tpu.memory_space<vmem>>, %arg8: memref<48x128xbf16, #tpu.memory_space<vmem>>, %arg9: memref<1x128xf32, #tpu.memory_space<vmem>>, %arg10: memref<128x128xf32, #tpu.memory_space<vmem>>) attributes {dimension_semantics = [#tpu.dimension_semantics<parallel>], iteration_bounds = array<i64: 2>, scalar_prefetch = 0 : i64, scratch_operands = 0 : i64, tpu.core_type = #tpu.core_type<tc>, window_params = [{transform_indices = @transform_0, window_bounds = array<i64: 128, 32>}, {pipeline_mode = #tpu.pipeline_mode<synchronous>, transform_indices = @transform_1, window_bounds = array<i64: 32, 64>}, {pipeline_mode = #tpu.pipeline_mode<synchronous>, transform_indices = @transform_2, window_bounds = array<i64: 1, 64>}, {pipeline_mode = #tpu.pipeline_mode<synchronous>, transform_indices = @transform_3, window_bounds = array<i64: 64, 64>}, {pipeline_mode = #tpu.pipeline_mode<synchronous>, transform_indices = @transform_4, window_bounds = array<i64: 1, 64>}, {pipeline_mode = #tpu.pipeline_mode<synchronous>, transform_indices = @transform_5, window_bounds = array<i64: 64, 48>}, {pipeline_mode = #tpu.pipeline_mode<synchronous>, transform_indices = @transform_6, window_bounds = array<i64: 1, 48>}, {pipeline_mode = #tpu.pipeline_mode<synchronous>, transform_indices = @transform_7, window_bounds = array<i64: 48, 128>}, {pipeline_mode = #tpu.pipeline_mode<synchronous>, transform_indices = @transform_8, window_bounds = array<i64: 1, 128>}, {transform_indices = @transform_9, window_bounds = array<i64: 128, 128>}]} {
    %c0 = arith.constant 0 : index
    %c0_0 = arith.constant 0 : index
    %0 = vector.load %arg1[%c0, %c0_0] : memref<128x32xbf16, #tpu.memory_space<vmem>>, vector<128x32xbf16>
    %c0_1 = arith.constant 0 : index
    %c0_2 = arith.constant 0 : index
    %1 = vector.load %arg2[%c0_1, %c0_2] : memref<32x64xbf16, #tpu.memory_space<vmem>>, vector<32x64xbf16>
    %cst = arith.constant dense<0.000000e+00> : vector<128x64xf32>
    %2 = tpu.matmul %0, %1, %cst {dimension_numbers = #tpu.dot_dimension_numbers<[1], [0], [0], [1], [0, 0, 1, 1], [], []>} : vector<128x32xbf16>, vector<32x64xbf16>, vector<128x64xf32> -> vector<128x64xf32>
    %c0_3 = arith.constant 0 : index
    %c0_4 = arith.constant 0 : index
    %3 = vector.load %arg3[%c0_3, %c0_4] : memref<1x64xf32, #tpu.memory_space<vmem>>, vector<1x64xf32>
    %4 = vector.broadcast %3 : vector<1x64xf32> to vector<128x64xf32>
    %5 = arith.addf %2, %4 : vector<128x64xf32>
    %cst_5 = arith.constant 0.000000e+00 : f32
    %6 = vector.broadcast %cst_5 : f32 to vector<128x64xf32>
    %7 = arith.maximumf %5, %6 : vector<128x64xf32>
    %8 = arith.truncf %7 : vector<128x64xf32> to vector<128x64xbf16>
    %c0_6 = arith.constant 0 : index
    %c0_7 = arith.constant 0 : index
    %9 = vector.load %arg4[%c0_6, %c0_7] : memref<64x64xbf16, #tpu.memory_space<vmem>>, vector<64x64xbf16>
    %cst_8 = arith.constant dense<0.000000e+00> : vector<128x64xf32>
    %10 = tpu.matmul %8, %9, %cst_8 {dimension_numbers = #tpu.dot_dimension_numbers<[1], [0], [0], [1], [0, 0, 1, 1], [], []>} : vector<128x64xbf16>, vector<64x64xbf16>, vector<128x64xf32> -> vector<128x64xf32>
    %c0_9 = arith.constant 0 : index
    %c0_10 = arith.constant 0 : index
    %11 = vector.load %arg5[%c0_9, %c0_10] : memref<1x64xf32, #tpu.memory_space<vmem>>, vector<1x64xf32>
    %12 = vector.broadcast %11 : vector<1x64xf32> to vector<128x64xf32>
    %13 = arith.addf %10, %12 : vector<128x64xf32>
    %cst_11 = arith.constant 0.000000e+00 : f32
    %14 = vector.broadcast %cst_11 : f32 to vector<128x64xf32>
    %15 = arith.maximumf %13, %14 : vector<128x64xf32>
    %16 = arith.truncf %15 : vector<128x64xf32> to vector<128x64xbf16>
    %c0_12 = arith.constant 0 : index
    %c0_13 = arith.constant 0 : index
    %17 = vector.load %arg6[%c0_12, %c0_13] : memref<64x48xbf16, #tpu.memory_space<vmem>>, vector<64x48xbf16>
    %cst_14 = arith.constant dense<0.000000e+00> : vector<128x48xf32>
    %18 = tpu.matmul %16, %17, %cst_14 {dimension_numbers = #tpu.dot_dimension_numbers<[1], [0], [0], [1], [0, 0, 1, 1], [], []>} : vector<128x64xbf16>, vector<64x48xbf16>, vector<128x48xf32> -> vector<128x48xf32>
    %c0_15 = arith.constant 0 : index
    %c0_16 = arith.constant 0 : index
    %19 = vector.load %arg7[%c0_15, %c0_16] : memref<1x48xf32, #tpu.memory_space<vmem>>, vector<1x48xf32>
    %20 = vector.broadcast %19 : vector<1x48xf32> to vector<128x48xf32>
    %21 = arith.addf %18, %20 : vector<128x48xf32>
    %cst_17 = arith.constant 0.000000e+00 : f32
    %22 = vector.broadcast %cst_17 : f32 to vector<128x48xf32>
    %23 = arith.maximumf %21, %22 : vector<128x48xf32>
    %24 = arith.truncf %23 : vector<128x48xf32> to vector<128x48xbf16>
    %c0_18 = arith.constant 0 : index
    %c0_19 = arith.constant 0 : index
    %25 = vector.load %arg8[%c0_18, %c0_19] : memref<48x128xbf16, #tpu.memory_space<vmem>>, vector<48x128xbf16>
    %cst_20 = arith.constant dense<0.000000e+00> : vector<128x128xf32>
    %26 = tpu.matmul %24, %25, %cst_20 {dimension_numbers = #tpu.dot_dimension_numbers<[1], [0], [0], [1], [0, 0, 1, 1], [], []>} : vector<128x48xbf16>, vector<48x128xbf16>, vector<128x128xf32> -> vector<128x128xf32>
    %c0_21 = arith.constant 0 : index
    %c0_22 = arith.constant 0 : index
    %27 = vector.load %arg9[%c0_21, %c0_22] : memref<1x128xf32, #tpu.memory_space<vmem>>, vector<1x128xf32>
    %28 = vector.broadcast %27 : vector<1x128xf32> to vector<128x128xf32>
    %29 = arith.addf %26, %28 : vector<128x128xf32>
    %cst_23 = arith.constant 0.000000e+00 : f32
    %30 = vector.broadcast %cst_23 : f32 to vector<128x128xf32>
    %31 = arith.maximumf %29, %30 : vector<128x128xf32>
    %c0_24 = arith.constant 0 : index
    %c0_25 = arith.constant 0 : index
    %32 = vector.load %arg10[%c0_24, %c0_25] : memref<128x128xf32, #tpu.memory_space<vmem>>, vector<128x128xf32>
    tpu.vector_store %arg10[%c0_24, %c0_25], %31 {strides = array<i32>} : memref<128x128xf32, #tpu.memory_space<vmem>>, vector<128x128xf32>,
    return
  }
  func.func @transform_0(%arg0: i32) -> (i32, i32) {
    %c0_i32 = arith.constant 0 : i32
    %c0_i32_0 = arith.constant 0 : i32
    return %arg0, %c0_i32 : i32, i32
  }
  func.func @transform_1(%arg0: i32) -> (i32, i32) {
    %c0_i32 = arith.constant 0 : i32
    %c0_i32_0 = arith.constant 0 : i32
    %c0_i32_1 = arith.constant 0 : i32
    return %c0_i32, %c0_i32_0 : i32, i32
  }
  func.func @transform_2(%arg0: i32) -> (i32, i32) {
    %c0_i32 = arith.constant 0 : i32
    %c0_i32_0 = arith.constant 0 : i32
    %c0_i32_1 = arith.constant 0 : i32
    return %c0_i32, %c0_i32_0 : i32, i32
  }
  func.func @transform_3(%arg0: i32) -> (i32, i32) {
    %c0_i32 = arith.constant 0 : i32
    %c0_i32_0 = arith.constant 0 : i32
    %c0_i32_1 = arith.constant 0 : i32
    return %c0_i32, %c0_i32_0 : i32, i32
  }
  func.func @transform_4(%arg0: i32) -> (i32, i32) {
    %c0_i32 = arith.constant 0 : i32
    %c0_i32_0 = arith.constant 0 : i32
    %c0_i32_1 = arith.constant 0 : i32
    return %c0_i32, %c0_i32_0 : i32, i32
  }
  func.func @transform_5(%arg0: i32) -> (i32, i32) {
    %c0_i32 = arith.constant 0 : i32
    %c0_i32_0 = arith.constant 0 : i32
    %c0_i32_1 = arith.constant 0 : i32
    return %c0_i32, %c0_i32_0 : i32, i32
  }
  func.func @transform_6(%arg0: i32) -> (i32, i32) {
    %c0_i32 = arith.constant 0 : i32
    %c0_i32_0 = arith.constant 0 : i32
    %c0_i32_1 = arith.constant 0 : i32
    return %c0_i32, %c0_i32_0 : i32, i32
  }
  func.func @transform_7(%arg0: i32) -> (i32, i32) {
    %c0_i32 = arith.constant 0 : i32
    %c0_i32_0 = arith.constant 0 : i32
    %c0_i32_1 = arith.constant 0 : i32
    return %c0_i32, %c0_i32_0 : i32, i32
  }
  func.func @transform_8(%arg0: i32) -> (i32, i32) {
    %c0_i32 = arith.constant 0 : i32
    %c0_i32_0 = arith.constant 0 : i32
    %c0_i32_1 = arith.constant 0 : i32
    return %c0_i32, %c0_i32_0 : i32, i32
  }
  func.func @transform_9(%arg0: i32) -> (i32, i32) {
    %c0_i32 = arith.constant 0 : i32
    %c0_i32_0 = arith.constant 0 : i32
    return %arg0, %c0_i32 : i32, i32
  }
}

</mosaic_0001>

<llo_original>
// kernel: tpu_custom_call.1
$region0: #{tpu_custom_call.1}
  #allocation0 [shape = 'u32[]', space=smem, size = 0x4, offset = 0x4, fixed_abs, tag = 'smem constant byte address 0x4 - core index']
  #allocation1 [shape = 'u32[72,128]{1,0:T(1,128)}', space=vmem, size = 0x9000, scoped, tag = 'internal scratch']
  %s0 = inlined_call_operand.vmem [shape: bf16[256,32], index: 0, kind: input, shape index: {}]
  %s1 = inlined_call_operand.vmem [shape: bf16[32,64], index: 1, kind: input, shape index: {}]
  %s2 = inlined_call_operand.vmem [shape: f32[1,64], index: 2, kind: input, shape index: {}]
  %s3 = inlined_call_operand.vmem [shape: bf16[64,64], index: 3, kind: input, shape index: {}]
  %s4 = inlined_call_operand.vmem [shape: f32[1,64], index: 4, kind: input, shape index: {}]
  %s5 = inlined_call_operand.vmem [shape: bf16[64,48], index: 5, kind: input, shape index: {}]
  %s6 = inlined_call_operand.vmem [shape: f32[1,48], index: 6, kind: input, shape index: {}]
  %s7 = inlined_call_operand.vmem [shape: bf16[48,128], index: 7, kind: input, shape index: {}]
  %s8 = inlined_call_operand.vmem [shape: f32[1,128], index: 8, kind: input, shape index: {}]
  %s9 = inlined_call_operand.hbm [shape: f32[256,128], index: 9, kind: output, shape index: {}]
  %s10 = sld [smem:[#allocation0]]
  $region69: #{tpu_custom_call.1} parent=0
    _
  %s12 = ssub.s32 1, %s10
  %s13 = scalar_select 0, %s12, %s10
  $region1: #{tpu_custom_call.1} parent=0
    #allocation2 [shape = 'u8[131072]{0}', space=vmem, size = 0x20000, scoped, tag = 'output window, operand 0']
    #allocation3 [shape = 's32[2]{0}', space=sflag, size = 0x8, scoped, tag = 'scoped memory for tpu_custom_call.1']
    %14 = vsyncpa [#allocation3], 0
    %s15 = scalar_lea.sflag [#allocation3], 1
    %16 = vsyncpa %s15, 0
    loop: start=0, step=1, limit=4
    $region2: #{tpu_custom_call.1} parent=1 // loop_pre_header
      _
    $region3: #{tpu_custom_call.1} parent=1 // loop_header
      %s18 = sphi 0, %s22
      %p19 = scmp.ge.s32.totalorder %s18, 4
      %s28 = sphi 0, %s30
      %s31 = sphi 0, %s28
      %s32 = sphi 0, %s31
      %s48 = sphi 0, %s32
      %s52 = sphi 0, %s52
      %s54 = sphi 0, %s52
      %s55 = sphi 0, %s54
      %s69 = sphi 0, %s55
      %s73 = sphi 0, %s73
      %s75 = sphi 0, %s73
      %s76 = sphi 0, %s75
      %s90 = sphi 0, %s76
      %s94 = sphi 0, %s94
      %s96 = sphi 0, %s94
      %s97 = sphi 0, %s96
      %s111 = sphi 0, %s97
      %s115 = sphi 0, %s115
      %s117 = sphi 0, %s115
      %s118 = sphi 0, %s117
      %s132 = sphi 0, %s118
      %s136 = sphi 0, %s136
      %s138 = sphi 0, %s136
      %s139 = sphi 0, %s138
      %s153 = sphi 0, %s139
      %s157 = sphi 0, %s157
      %s159 = sphi 0, %s157
      %s160 = sphi 0, %s159
      %s174 = sphi 0, %s160
      %s178 = sphi 0, %s178
      %s180 = sphi 0, %s178
      %s181 = sphi 0, %s180
      %s195 = sphi 0, %s181
      %s199 = sphi 0, %s199
      %s201 = sphi 0, %s199
      %s202 = sphi 0, %s201
      %s216 = sphi 0, %s202
      %s222 = sphi 0, %s224
      %s225 = sphi 0, %s222
      %s226 = sphi 0, %s225
      %s242 = sphi 0, %s226
    $region4: #{tpu_custom_call.1} parent=1 // loop_header_branch
      %21 = sbr.rel (%p19) target = $region8
    $region5: #{tpu_custom_call.1} parent=1 // loop_body
      %s23 = ssub.s32 %s18, 1
      %s24 = ssub.s32 %s18, 2
      %s25 = sadd.s32 %s18, 1
      %s26 = ssub.s32 %s18, %s25
      %p27 = scmp.eq.s32.totalorder %s26, 0
      %s29 = sadd.s32 %s28, 1
      %s30 = scalar_select %p27, %s28, %s29
      %p33 = pneg %p27
      %p34 = scmp.eq.s32.totalorder %s18, 1
      %p35 = por %p33, %p34
      %p36 = scmp.ne.s32.totalorder %s28, %s31
      %p37 = scmp.eq.s32.totalorder %s18, 0
      %p38 = por %p36, %p37
      %p39 = scmp.ne.s32.totalorder %s28, %s31
      %p40 = scmp.eq.s32.totalorder %s23, 1
      %p41 = por %p39, %p40
      %p42 = scmp.ne.s32.totalorder %s31, %s32
      %p43 = scmp.eq.s32.totalorder %s23, 0
      %p44 = por %p42, %p43
      %p45 = scmp.ne.s32.totalorder %s31, %s32
      %p46 = scmp.eq.s32.totalorder %s24, 1
      %p47 = por %p45, %p46
      %p49 = scmp.ne.s32.totalorder %s32, %s48
      %p50 = scmp.eq.s32.totalorder %s24, 0
      %p51 = por %p49, %p50
      %s53 = sadd.s32 %s52, 1
      %p56 = scmp.eq.s32.totalorder %s18, 1
      %p57 = scmp.ne.s32.totalorder %s52, %s54
      %p58 = scmp.eq.s32.totalorder %s18, 0
      %p59 = por %p57, %p58
      %p60 = scmp.ne.s32.totalorder %s52, %s54
      %p61 = scmp.eq.s32.totalorder %s23, 1
      %p62 = por %p60, %p61
      %p63 = scmp.ne.s32.totalorder %s54, %s55
      %p64 = scmp.eq.s32.totalorder %s23, 0
      %p65 = por %p63, %p64
      %p66 = scmp.ne.s32.totalorder %s54, %s55
      %p67 = scmp.eq.s32.totalorder %s24, 1
      %p68 = por %p66, %p67
      %p70 = scmp.ne.s32.totalorder %s55, %s69
      %p71 = scmp.eq.s32.totalorder %s24, 0
      %p72 = por %p70, %p71
      %s74 = sadd.s32 %s73, 1
      %p77 = scmp.eq.s32.totalorder %s18, 1
      %p78 = scmp.ne.s32.totalorder %s73, %s75
      %p79 = scmp.eq.s32.totalorder %s18, 0
      %p80 = por %p78, %p79
      %p81 = scmp.ne.s32.totalorder %s73, %s75
      %p82 = scmp.eq.s32.totalorder %s23, 1
      %p83 = por %p81, %p82
      %p84 = scmp.ne.s32.totalorder %s75, %s76
      %p85 = scmp.eq.s32.totalorder %s23, 0
      %p86 = por %p84, %p85
      %p87 = scmp.ne.s32.totalorder %s75, %s76
      %p88 = scmp.eq.s32.totalorder %s24, 1
      %p89 = por %p87, %p88
      %p91 = scmp.ne.s32.totalorder %s76, %s90
      %p92 = scmp.eq.s32.totalorder %s24, 0
      %p93 = por %p91, %p92
      %s95 = sadd.s32 %s94, 1
      %p98 = scmp.eq.s32.totalorder %s18, 1
      %p99 = scmp.ne.s32.totalorder %s94, %s96
      %p100 = scmp.eq.s32.totalorder %s18, 0
      %p101 = por %p99, %p100
      %p102 = scmp.ne.s32.totalorder %s94, %s96
      %p103 = scmp.eq.s32.totalorder %s23, 1
      %p104 = por %p102, %p103
      %p105 = scmp.ne.s32.totalorder %s96, %s97
      %p106 = scmp.eq.s32.totalorder %s23, 0
      %p107 = por %p105, %p106
      %p108 = scmp.ne.s32.totalorder %s96, %s97
      %p109 = scmp.eq.s32.totalorder %s24, 1
      %p110 = por %p108, %p109
      %p112 = scmp.ne.s32.totalorder %s97, %s111
      %p113 = scmp.eq.s32.totalorder %s24, 0
      %p114 = por %p112, %p113
      %s116 = sadd.s32 %s115, 1
      %p119 = scmp.eq.s32.totalorder %s18, 1
      %p120 = scmp.ne.s32.totalorder %s115, %s117
      %p121 = scmp.eq.s32.totalorder %s18, 0
      %p122 = por %p120, %p121
      %p123 = scmp.ne.s32.totalorder %s115, %s117
      %p124 = scmp.eq.s32.totalorder %s23, 1
      %p125 = por %p123, %p124
      %p126 = scmp.ne.s32.totalorder %s117, %s118
      %p127 = scmp.eq.s32.totalorder %s23, 0
      %p128 = por %p126, %p127
      %p129 = scmp.ne.s32.totalorder %s117, %s118
      %p130 = scmp.eq.s32.totalorder %s24, 1
      %p131 = por %p129, %p130
      %p133 = scmp.ne.s32.totalorder %s118, %s132
      %p134 = scmp.eq.s32.totalorder %s24, 0
      %p135 = por %p133, %p134
      %s137 = sadd.s32 %s136, 1
      %p140 = scmp.eq.s32.totalorder %s18, 1
      %p141 = scmp.ne.s32.totalorder %s136, %s138
      %p142 = scmp.eq.s32.totalorder %s18, 0
      %p143 = por %p141, %p142
      %p144 = scmp.ne.s32.totalorder %s136, %s138
      %p145 = scmp.eq.s32.totalorder %s23, 1
      %p146 = por %p144, %p145
      %p147 = scmp.ne.s32.totalorder %s138, %s139
      %p148 = scmp.eq.s32.totalorder %s23, 0
      %p149 = por %p147, %p148
      %p150 = scmp.ne.s32.totalorder %s138, %s139
      %p151 = scmp.eq.s32.totalorder %s24, 1
      %p152 = por %p150, %p151
      %p154 = scmp.ne.s32.totalorder %s139, %s153
      %p155 = scmp.eq.s32.totalorder %s24, 0
      %p156 = por %p154, %p155
      %s158 = sadd.s32 %s157, 1
      %p161 = scmp.eq.s32.totalorder %s18, 1
      %p162 = scmp.ne.s32.totalorder %s157, %s159
      %p163 = scmp.eq.s32.totalorder %s18, 0
      %p164 = por %p162, %p163
      %p165 = scmp.ne.s32.totalorder %s157, %s159
      %p166 = scmp.eq.s32.totalorder %s23, 1
      %p167 = por %p165, %p166
      %p168 = scmp.ne.s32.totalorder %s159, %s160
      %p169 = scmp.eq.s32.totalorder %s23, 0
      %p170 = por %p168, %p169
      %p171 = scmp.ne.s32.totalorder %s159, %s160
      %p172 = scmp.eq.s32.totalorder %s24, 1
      %p173 = por %p171, %p172
      %p175 = scmp.ne.s32.totalorder %s160, %s174
      %p176 = scmp.eq.s32.totalorder %s24, 0
      %p177 = por %p175, %p176
      %s179 = sadd.s32 %s178, 1
      %p182 = scmp.eq.s32.totalorder %s18, 1
      %p183 = scmp.ne.s32.totalorder %s178, %s180
      %p184 = scmp.eq.s32.totalorder %s18, 0
      %p185 = por %p183, %p184
      %p186 = scmp.ne.s32.totalorder %s178, %s180
      %p187 = scmp.eq.s32.totalorder %s23, 1
      %p188 = por %p186, %p187
      %p189 = scmp.ne.s32.totalorder %s180, %s181
      %p190 = scmp.eq.s32.totalorder %s23, 0
      %p191 = por %p189, %p190
      %p192 = scmp.ne.s32.totalorder %s180, %s181
      %p193 = scmp.eq.s32.totalorder %s24, 1
      %p194 = por %p192, %p193
      %p196 = scmp.ne.s32.totalorder %s181, %s195
      %p197 = scmp.eq.s32.totalorder %s24, 0
      %p198 = por %p196, %p197
      %s200 = sadd.s32 %s199, 1
      %p203 = scmp.eq.s32.totalorder %s18, 1
      %p204 = scmp.ne.s32.totalorder %s199, %s201
      %p205 = scmp.eq.s32.totalorder %s18, 0
      %p206 = por %p204, %p205
      %p207 = scmp.ne.s32.totalorder %s199, %s201
      %p208 = scmp.eq.s32.totalorder %s23, 1
      %p209 = por %p207, %p208
      %p210 = scmp.ne.s32.totalorder %s201, %s202
      %p211 = scmp.eq.s32.totalorder %s23, 0
      %p212 = por %p210, %p211
      %p213 = scmp.ne.s32.totalorder %s201, %s202
      %p214 = scmp.eq.s32.totalorder %s24, 1
      %p215 = por %p213, %p214
      %p217 = scmp.ne.s32.totalorder %s202, %s216
      %p218 = scmp.eq.s32.totalorder %s24, 0
      %p219 = por %p217, %p218
      %s220 = ssub.s32 %s18, %s25
      %p221 = scmp.eq.s32.totalorder %s220, 0
      %s223 = sadd.s32 %s222, 1
      %s224 = scalar_select %p221, %s222, %s223
      %p227 = pneg %p221
      %p228 = scmp.eq.s32.totalorder %s18, 1
      %p229 = por %p227, %p228
      %p230 = scmp.ne.s32.totalorder %s222, %s225
      %p231 = scmp.eq.s32.totalorder %s18, 0
      %p232 = por %p230, %p231
      %p233 = scmp.ne.s32.totalorder %s222, %s225
      %p234 = scmp.eq.s32.totalorder %s23, 1
      %p235 = por %p233, %p234
      %p236 = scmp.ne.s32.totalorder %s225, %s226
      %p237 = scmp.eq.s32.totalorder %s23, 0
      %p238 = por %p236, %p237
      %p239 = scmp.ne.s32.totalorder %s225, %s226
      %p240 = scmp.eq.s32.totalorder %s24, 1
      %p241 = por %p239, %p240
      %p243 = scmp.ne.s32.totalorder %s226, %s242
      %p244 = scmp.eq.s32.totalorder %s24, 0
      %p245 = por %p243, %p244
      %p246 = scmp.le.s32.totalorder 1, %s18
      %p247 = scmp.lt.s32.totalorder %s18, 3
      %p248 = pnand %p246, %p247
      %p249 = pneg %p248
      // Predicated region
      $region9: #{tpu_custom_call.1} parent=5 // pred_check
        _
      $region10: #{tpu_custom_call.1} parent=5 // pred_check_branch
        %251 = sbr.rel (%p248) target = $region12
      $region11: #{tpu_custom_call.1} parent=5 // pred_region
        %s252 = ssub.s32 %s18, 1
        // Predicated region
        $region13: #{tpu_custom_call.1} parent=11 // pred_check
          %p253 = pneg %p65
        $region14: #{tpu_custom_call.1} parent=11 // pred_check_branch
          %255 = sbr.rel (%p253) target = $region16
        $region15: #{tpu_custom_call.1} parent=11 // pred_region
          _
        $region16: #{tpu_custom_call.1} parent=11 // pred_fallthru
          _
        // Predicated region
        $region17: #{tpu_custom_call.1} parent=11 // pred_check
          %p256 = pneg %p86
        $region18: #{tpu_custom_call.1} parent=11 // pred_check_branch
          %258 = sbr.rel (%p256) target = $region20
        $region19: #{tpu_custom_call.1} parent=11 // pred_region
          _
        $region20: #{tpu_custom_call.1} parent=11 // pred_fallthru
          _
        // Predicated region
        $region21: #{tpu_custom_call.1} parent=11 // pred_check
          %p259 = pneg %p107
        $region22: #{tpu_custom_call.1} parent=11 // pred_check_branch
          %261 = sbr.rel (%p259) target = $region24
        $region23: #{tpu_custom_call.1} parent=11 // pred_region
          _
        $region24: #{tpu_custom_call.1} parent=11 // pred_fallthru
          _
        // Predicated region
        $region25: #{tpu_custom_call.1} parent=11 // pred_check
          %p262 = pneg %p128
        $region26: #{tpu_custom_call.1} parent=11 // pred_check_branch
          %264 = sbr.rel (%p262) target = $region28
        $region27: #{tpu_custom_call.1} parent=11 // pred_region
          _
        $region28: #{tpu_custom_call.1} parent=11 // pred_fallthru
          _
        // Predicated region
        $region29: #{tpu_custom_call.1} parent=11 // pred_check
          %p265 = pneg %p149
        $region30: #{tpu_custom_call.1} parent=11 // pred_check_branch
          %267 = sbr.rel (%p265) target = $region32
        $region31: #{tpu_custom_call.1} parent=11 // pred_region
          _
        $region32: #{tpu_custom_call.1} parent=11 // pred_fallthru
          _
        // Predicated region
        $region33: #{tpu_custom_call.1} parent=11 // pred_check
          %p268 = pneg %p170
        $region34: #{tpu_custom_call.1} parent=11 // pred_check_branch
          %270 = sbr.rel (%p268) target = $region36
        $region35: #{tpu_custom_call.1} parent=11 // pred_region
          _
        $region36: #{tpu_custom_call.1} parent=11 // pred_fallthru
          _
        // Predicated region
        $region37: #{tpu_custom_call.1} parent=11 // pred_check
          %p271 = pneg %p191
        $region38: #{tpu_custom_call.1} parent=11 // pred_check_branch
          %273 = sbr.rel (%p271) target = $region40
        $region39: #{tpu_custom_call.1} parent=11 // pred_region
          _
        $region40: #{tpu_custom_call.1} parent=11 // pred_fallthru
          _
        // Predicated region
        $region41: #{tpu_custom_call.1} parent=11 // pred_check
          %p274 = pneg %p212
        $region42: #{tpu_custom_call.1} parent=11 // pred_check_branch
          %276 = sbr.rel (%p274) target = $region44
        $region43: #{tpu_custom_call.1} parent=11 // pred_region
          _
        $region44: #{tpu_custom_call.1} parent=11 // pred_fallthru
          _
      $region12: #{tpu_custom_call.1} parent=5 // pred_fallthru
        _
      %p277 = scmp.lt.s32.totalorder %s18, 2
      // Predicated region
      $region45: #{tpu_custom_call.1} parent=5 // pred_check
        %p278 = pneg %p277
      $region46: #{tpu_custom_call.1} parent=5 // pred_check_branch
        %280 = sbr.rel (%p278) target = $region48
      $region47: #{tpu_custom_call.1} parent=5 // pred_region
        // Predicated region
        $region49: #{tpu_custom_call.1} parent=47 // pred_check
          %p281 = pneg %p38
        $region50: #{tpu_custom_call.1} parent=47 // pred_check_branch
          %283 = sbr.rel (%p281) target = $region52
        $region51: #{tpu_custom_call.1} parent=47 // pred_region
          %s284 = smul.u32 16, %s18
          %p285 = scmp.lt.s32.totalorder %s284, 31
          %s286 = scalar_select %p285, %s284, 31
          %s287 = smul.addr %s286, 4
          %s288 = scalar_lea.vmem %s0, %s287
          %s289 = smul.u32 16, %s18
        $region52: #{tpu_custom_call.1} parent=47 // pred_fallthru
          _
      $region48: #{tpu_custom_call.1} parent=5 // pred_fallthru
        _
      %p290 = scmp.le.s32.totalorder 1, %s18
      %p291 = scmp.lt.s32.totalorder %s18, 3
      %p292 = pnand %p290, %p291
      %p293 = pneg %p292
      // Predicated region
      $region53: #{tpu_custom_call.1} parent=5 // pred_check
        _
      $region54: #{tpu_custom_call.1} parent=5 // pred_check_branch
        %295 = sbr.rel (%p292) target = $region56
      $region55: #{tpu_custom_call.1} parent=5 // pred_region
        %s296 = ssub.s32 %s18, 1
        %s297 = smul.u32 16, %s23
        %p298 = scmp.lt.s32.totalorder %s297, 31
        %s299 = scalar_select %p298, %s297, 31
        %s300 = smul.addr %s299, 4
        %s301 = scalar_lea.vmem %s0, %s300
        %p302 = pneg %p44
        %p303 = pneg %p41
        %p304 = pneg %p65
        %p305 = pneg %p62
        %p306 = pneg %p86
        %p307 = pneg %p83
        %p308 = pneg %p107
        %p309 = pneg %p104
        %p310 = pneg %p128
        %p311 = pneg %p125
        %p312 = pneg %p149
        %p313 = pneg %p146
        %p314 = pneg %p170
        %p315 = pneg %p167
        %p316 = pneg %p191
        %p317 = pneg %p188
        %p318 = pneg %p212
        %p319 = pneg %p209
        %p320 = pneg %p238
        %p321 = pneg %p235
        %s322 = sand.u32 %s225, 1
        %s323 = scalar_lea.sflag [#allocation3], %s322
        %s324 = sand.u32 %s225, 1
        %s325 = smul.addr %s324, 128
        %s326 = scalar_lea.vmem [#allocation2], %s325
        %s327 = smul.u32 16, %s23
        %p328 = scmp.lt.s32.totalorder %s327, 31
        %s329 = scalar_select %p328, %s327, 31
        %s330 = smul.addr %s329, 4
        %s331 = scalar_lea.vmem %s0, %s330
        %s332 = smul.u32 16, %s23
        %s333 = smul.u32 16, %s23
        %v335 = vld [vmem:[%s331] sm:$0xf]
        %v336 = vld [vmem:[%s331 + $0x4] sm:$0xf]
        %v337 = vld [vmem:[%s331 + $0x8] sm:$0xf]
        %v338 = vld [vmem:[%s331 + $0xc] sm:$0xf]
        %v339 = vld [vmem:[%s331 + $0x10] sm:$0xf]
        %v340 = vld [vmem:[%s331 + $0x14] sm:$0xf]
        %v341 = vld [vmem:[%s331 + $0x18] sm:$0xf]
        %v342 = vld [vmem:[%s331 + $0x1c] sm:$0xf]
        %v343 = vld [vmem:[%s331 + $0x20] sm:$0xf]
        %v344 = vld [vmem:[%s331 + $0x24] sm:$0xf]
        %v345 = vld [vmem:[%s331 + $0x28] sm:$0xf]
        %v346 = vld [vmem:[%s331 + $0x2c] sm:$0xf]
        %v347 = vld [vmem:[%s331 + $0x30] sm:$0xf]
        %v348 = vld [vmem:[%s331 + $0x34] sm:$0xf]
        %v349 = vld [vmem:[%s331 + $0x38] sm:$0xf]
        %v350 = vld [vmem:[%s331 + $0x3c] sm:$0xf]
        %v351 = vld [vmem:[%s1] sm:$0xf]
        %v352 = vld [vmem:[%s1 + $0x4] sm:$0xf]
        %v353 = vld [vmem:[%s1 + $0x8] sm:$0xf]
        %v354 = vld [vmem:[%s1 + $0xc] sm:$0xf]
        %v355 = vld [vmem:[%s2] sm:$0x1]
        %v357 = vperm.slane %v355, 0
        %v375 = vunpack.c.l.b16 %v335
        %v376 = vunpack.c.l.b16 %v336
        %v377 = vunpack.c.l.b16 %v337
        %v378 = vunpack.c.l.b16 %v338
        %v379 = vunpack.c.l.b16 %v339
        %v380 = vunpack.c.l.b16 %v340
        %v381 = vunpack.c.l.b16 %v341
        %v382 = vunpack.c.l.b16 %v342
        %v383 = vunpack.c.l.b16 %v343
        %v384 = vunpack.c.l.b16 %v344
        %v385 = vunpack.c.l.b16 %v345
        %v386 = vunpack.c.l.b16 %v346
        %v387 = vunpack.c.l.b16 %v347
        %v388 = vunpack.c.l.b16 %v348
        %v389 = vunpack.c.l.b16 %v349
        %v390 = vunpack.c.l.b16 %v350
        %v391 = vpack.c.b16 %v376, %v375
        %v392 = vpack.c.b16 %v378, %v377
        %v393 = vpack.c.b16 %v380, %v379
        %v394 = vpack.c.b16 %v382, %v381
        %v395 = vpack.c.b16 %v384, %v383
        %v396 = vpack.c.b16 %v386, %v385
        %v397 = vpack.c.b16 %v388, %v387
        %v398 = vpack.c.b16 %v390, %v389
        %v403 = vunpack.c.l.b16 %v351
        %v404 = vunpack.c.l.b16 %v352
        %v405 = vunpack.c.l.b16 %v353
        %v406 = vunpack.c.l.b16 %v354
        %v407 = vpack.c.b16 %v404, %v403
        %v408 = vpack.c.b16 %v406, %v405
        %vm411 = vcmask 261120
        %v413 = vsel %vm411, %v391, 0
        %v416 = vsel %vm411, %v392, 0
        %v419 = vsel %vm411, %v393, 0
        %v422 = vsel %vm411, %v394, 0
        %v425 = vsel %vm411, %v395, 0
        %v428 = vsel %vm411, %v396, 0
        %v431 = vsel %vm411, %v397, 0
        %v434 = vsel %vm411, %v398, 0
        %436 = vmatpush.bf16.msra.mxu0 0
        %437 = vmatpush.bf16.msra.mxu0 0
        %438 = vmatpush.bf16.msra.mxu0 0
        %439 = vmatpush.bf16.msra.mxu0 0
        %440 = vmatpush.bf16.msra.mxu0 0
        %441 = vmatpush.bf16.msra.mxu0 0
        %442 = vmatpush.bf16.msra.mxu0 %v408
        %443 = vmatpush.bf16.msra.mxu0 %v407
        %444 = vmatmul.bf16.gmra.mxu0 %v413
        %v445 = vpop.f32.mrf.mxu0
        %v446 = vadd.f32 %v357, %v445
        %v447 = vpop.f32.mrf.mxu0
        %v448 = vadd.f32 %v357, %v447
        %449 = vmatmul.bf16.gmra.mxu0 %v416
        %v450 = vpop.f32.mrf.mxu0
        %v451 = vadd.f32 %v357, %v450
        %v452 = vpop.f32.mrf.mxu0
        %v453 = vadd.f32 %v357, %v452
        %454 = vmatmul.bf16.gmra.mxu0 %v419
        %v455 = vpop.f32.mrf.mxu0
        %v456 = vadd.f32 %v357, %v455
        %v457 = vpop.f32.mrf.mxu0
        %v458 = vadd.f32 %v357, %v457
        %459 = vmatmul.bf16.gmra.mxu0 %v422
        %v460 = vpop.f32.mrf.mxu0
        %v461 = vadd.f32 %v357, %v460
        %v462 = vpop.f32.mrf.mxu0
        %v463 = vadd.f32 %v357, %v462
        %464 = vmatmul.bf16.gmra.mxu0 %v425
        %v465 = vpop.f32.mrf.mxu0
        %v466 = vadd.f32 %v357, %v465
        %v467 = vpop.f32.mrf.mxu0
        %v468 = vadd.f32 %v357, %v467
        %469 = vmatmul.bf16.gmra.mxu0 %v428
        %v470 = vpop.f32.mrf.mxu0
        %v471 = vadd.f32 %v357, %v470
        %v472 = vpop.f32.mrf.mxu0
        %v473 = vadd.f32 %v357, %v472
        %474 = vmatmul.bf16.gmra.mxu0 %v431
        %v475 = vpop.f32.mrf.mxu0
        %v476 = vadd.f32 %v357, %v475
        %v477 = vpop.f32.mrf.mxu0
        %v478 = vadd.f32 %v357, %v477
        %479 = vmatmul.bf16.gmra.mxu0 %v434
        %v480 = vpop.f32.mrf.mxu0
        %v481 = vadd.f32 %v357, %v480
        %v482 = vpop.f32.mrf.mxu0
        %v483 = vadd.f32 %v357, %v482
        %484 = vdwg.mxu0
        %v485 = vmax.f32 %v446, 0.0
        %v486 = vmax.f32 %v448, 0.0
        %v487 = vmax.f32 %v451, 0.0
        %v488 = vmax.f32 %v453, 0.0
        %v489 = vmax.f32 %v456, 0.0
        %v490 = vmax.f32 %v458, 0.0
        %v491 = vmax.f32 %v461, 0.0
        %v492 = vmax.f32 %v463, 0.0
        %v493 = vmax.f32 %v466, 0.0
        %v494 = vmax.f32 %v468, 0.0
        %v495 = vmax.f32 %v471, 0.0
        %v496 = vmax.f32 %v473, 0.0
        %v497 = vmax.f32 %v476, 0.0
        %v498 = vmax.f32 %v478, 0.0
        %v499 = vmax.f32 %v481, 0.0
        %v500 = vmax.f32 %v483, 0.0
        %v501 = vpack.c.bf16 %v486, %v485
        %v502 = vpack.c.bf16 %v488, %v487
        %v503 = vpack.c.bf16 %v490, %v489
        %v504 = vpack.c.bf16 %v492, %v491
        %v505 = vpack.c.bf16 %v494, %v493
        %v506 = vpack.c.bf16 %v496, %v495
        %v507 = vpack.c.bf16 %v498, %v497
        %v508 = vpack.c.bf16 %v500, %v499
        %v509 = vld [vmem:[%s3] sm:$0xf]
        %v510 = vld [vmem:[%s3 + $0x4] sm:$0xf]
        %v511 = vld [vmem:[%s3 + $0x8] sm:$0xf]
        %v512 = vld [vmem:[%s3 + $0xc] sm:$0xf]
        %v513 = vld [vmem:[%s3 + $0x10] sm:$0xf]
        %v514 = vld [vmem:[%s3 + $0x14] sm:$0xf]
        %v515 = vld [vmem:[%s3 + $0x18] sm:$0xf]
        %v516 = vld [vmem:[%s3 + $0x1c] sm:$0xf]
        %v517 = vld [vmem:[%s4] sm:$0x1]
        %v519 = vperm.slane %v517, 0
        %v529 = vunpack.c.l.b16 %v509
        %v530 = vunpack.c.l.b16 %v510
        %v531 = vunpack.c.l.b16 %v511
        %v532 = vunpack.c.l.b16 %v512
        %v533 = vunpack.c.l.b16 %v513
        %v534 = vunpack.c.l.b16 %v514
        %v535 = vunpack.c.l.b16 %v515
        %v536 = vunpack.c.l.b16 %v516
        %v537 = vpack.c.b16 %v530, %v529
        %v538 = vpack.c.b16 %v532, %v531
        %v539 = vpack.c.b16 %v534, %v533
        %v540 = vpack.c.b16 %v536, %v535
        %vm545 = vcmask 523264
        %v547 = vsel %vm545, %v501, 0
        %v550 = vsel %vm545, %v502, 0
        %v553 = vsel %vm545, %v503, 0
        %v556 = vsel %vm545, %v504, 0
        %v559 = vsel %vm545, %v505, 0
        %v562 = vsel %vm545, %v506, 0
        %v565 = vsel %vm545, %v507, 0
        %v568 = vsel %vm545, %v508, 0
        %570 = vmatpush.bf16.msra.mxu0 0
        %571 = vmatpush.bf16.msra.mxu0 0
        %572 = vmatpush.bf16.msra.mxu0 0
        %573 = vmatpush.bf16.msra.mxu0 0
        %574 = vmatpush.bf16.msra.mxu0 %v540
        %575 = vmatpush.bf16.msra.mxu0 %v539
        %576 = vmatpush.bf16.msra.mxu0 %v538
        %577 = vmatpush.bf16.msra.mxu0 %v537
        %578 = vmatmul.bf16.gmra.mxu0 %v547
        %v579 = vpop.f32.mrf.mxu0
        %v580 = vadd.f32 %v519, %v579
        %v581 = vpop.f32.mrf.mxu0
        %v582 = vadd.f32 %v519, %v581
        %583 = vmatmul.bf16.gmra.mxu0 %v550
        %v584 = vpop.f32.mrf.mxu0
        %v585 = vadd.f32 %v519, %v584
        %v586 = vpop.f32.mrf.mxu0
        %v587 = vadd.f32 %v519, %v586
        %588 = vmatmul.bf16.gmra.mxu0 %v553
        %v589 = vpop.f32.mrf.mxu0
        %v590 = vadd.f32 %v519, %v589
        %v591 = vpop.f32.mrf.mxu0
        %v592 = vadd.f32 %v519, %v591
        %593 = vmatmul.bf16.gmra.mxu0 %v556
        %v594 = vpop.f32.mrf.mxu0
        %v595 = vadd.f32 %v519, %v594
        %v596 = vpop.f32.mrf.mxu0
        %v597 = vadd.f32 %v519, %v596
        %598 = vmatmul.bf16.gmra.mxu0 %v559
        %v599 = vpop.f32.mrf.mxu0
        %v600 = vadd.f32 %v519, %v599
        %v601 = vpop.f32.mrf.mxu0
        %v602 = vadd.f32 %v519, %v601
        %603 = vmatmul.bf16.gmra.mxu0 %v562
        %v604 = vpop.f32.mrf.mxu0
        %v605 = vadd.f32 %v519, %v604
        %v606 = vpop.f32.mrf.mxu0
        %v607 = vadd.f32 %v519, %v606
        %608 = vmatmul.bf16.gmra.mxu0 %v565
        %v609 = vpop.f32.mrf.mxu0
        %v610 = vadd.f32 %v519, %v609
        %v611 = vpop.f32.mrf.mxu0
        %v612 = vadd.f32 %v519, %v611
        %613 = vmatmul.bf16.gmra.mxu0 %v568
        %v614 = vpop.f32.mrf.mxu0
        %v615 = vadd.f32 %v519, %v614
        %v616 = vpop.f32.mrf.mxu0
        %v617 = vadd.f32 %v519, %v616
        %618 = vdwg.mxu0
        %v619 = vmax.f32 %v580, 0.0
        %v620 = vmax.f32 %v582, 0.0
        %v621 = vmax.f32 %v585, 0.0
        %v622 = vmax.f32 %v587, 0.0
        %v623 = vmax.f32 %v590, 0.0
        %v624 = vmax.f32 %v592, 0.0
        %v625 = vmax.f32 %v595, 0.0
        %v626 = vmax.f32 %v597, 0.0
        %v627 = vmax.f32 %v600, 0.0
        %v628 = vmax.f32 %v602, 0.0
        %v629 = vmax.f32 %v605, 0.0
        %v630 = vmax.f32 %v607, 0.0
        %v631 = vmax.f32 %v610, 0.0
        %v632 = vmax.f32 %v612, 0.0
        %v633 = vmax.f32 %v615, 0.0
        %v634 = vmax.f32 %v617, 0.0
        %v635 = vpack.c.bf16 %v620, %v619
        %v636 = vpack.c.bf16 %v622, %v621
        %v637 = vpack.c.bf16 %v624, %v623
        %v638 = vpack.c.bf16 %v626, %v625
        %v639 = vpack.c.bf16 %v628, %v627
        %v640 = vpack.c.bf16 %v630, %v629
        %v641 = vpack.c.bf16 %v632, %v631
        %v642 = vpack.c.bf16 %v634, %v633
        %v643 = vld [vmem:[%s5] sm:$0xf]
        %v644 = vld [vmem:[%s5 + $0x4] sm:$0xf]
        %v645 = vld [vmem:[%s5 + $0x8] sm:$0xf]
        %v646 = vld [vmem:[%s5 + $0xc] sm:$0xf]
        %v647 = vld [vmem:[%s5 + $0x10] sm:$0xf]
        %v648 = vld [vmem:[%s5 + $0x14] sm:$0xf]
        %v649 = vld [vmem:[%s5 + $0x18] sm:$0xf]
        %v650 = vld [vmem:[%s5 + $0x1c] sm:$0xf]
        %v651 = vld [vmem:[%s6] sm:$0x1]
        %v653 = vperm.slane %v651, 0
        %v663 = vunpack.c.l.b16 %v643
        %v664 = vunpack.c.l.b16 %v644
        %v665 = vunpack.c.l.b16 %v645
        %v666 = vunpack.c.l.b16 %v646
        %v667 = vunpack.c.l.b16 %v647
        %v668 = vunpack.c.l.b16 %v648
        %v669 = vunpack.c.l.b16 %v649
        %v670 = vunpack.c.l.b16 %v650
        %v671 = vpack.c.b16 %v664, %v663
        %v672 = vpack.c.b16 %v666, %v665
        %v673 = vpack.c.b16 %v668, %v667
        %v674 = vpack.c.b16 %v670, %v669
        %v680 = vsel %vm545, %v635, 0
        %v683 = vsel %vm545, %v636, 0
        %v686 = vsel %vm545, %v637, 0
        %v689 = vsel %vm545, %v638, 0
        %v692 = vsel %vm545, %v639, 0
        %v695 = vsel %vm545, %v640, 0
        %v698 = vsel %vm545, %v641, 0
        %v701 = vsel %vm545, %v642, 0
        %703 = vmatpush.bf16.msra.mxu0 0
        %704 = vmatpush.bf16.msra.mxu0 0
        %705 = vmatpush.bf16.msra.mxu0 0
        %706 = vmatpush.bf16.msra.mxu0 0
        %707 = vmatpush.bf16.msra.mxu0 %v674
        %708 = vmatpush.bf16.msra.mxu0 %v673
        %709 = vmatpush.bf16.msra.mxu0 %v672
        %710 = vmatpush.bf16.msra.mxu0 %v671
        %711 = vmatmul.bf16.gmra.mxu0 %v680
        %v712 = vpop.f32.mrf.mxu0
        %v713 = vadd.f32 %v653, %v712
        %v714 = vpop.f32.mrf.mxu0
        %v715 = vadd.f32 %v653, %v714
        %716 = vmatmul.bf16.gmra.mxu0 %v683
        %v717 = vpop.f32.mrf.mxu0
        %v718 = vadd.f32 %v653, %v717
        %v719 = vpop.f32.mrf.mxu0
        %v720 = vadd.f32 %v653, %v719
        %721 = vmatmul.bf16.gmra.mxu0 %v686
        %v722 = vpop.f32.mrf.mxu0
        %v723 = vadd.f32 %v653, %v722
        %v724 = vpop.f32.mrf.mxu0
        %v725 = vadd.f32 %v653, %v724
        %726 = vmatmul.bf16.gmra.mxu0 %v689
        %v727 = vpop.f32.mrf.mxu0
        %v728 = vadd.f32 %v653, %v727
        %v729 = vpop.f32.mrf.mxu0
        %v730 = vadd.f32 %v653, %v729
        %731 = vmatmul.bf16.gmra.mxu0 %v692
        %v732 = vpop.f32.mrf.mxu0
        %v733 = vadd.f32 %v653, %v732
        %v734 = vpop.f32.mrf.mxu0
        %v735 = vadd.f32 %v653, %v734
        %736 = vmatmul.bf16.gmra.mxu0 %v695
        %v737 = vpop.f32.mrf.mxu0
        %v738 = vadd.f32 %v653, %v737
        %v739 = vpop.f32.mrf.mxu0
        %v740 = vadd.f32 %v653, %v739
        %741 = vmatmul.bf16.gmra.mxu0 %v698
        %v742 = vpop.f32.mrf.mxu0
        %v743 = vadd.f32 %v653, %v742
        %v744 = vpop.f32.mrf.mxu0
        %v745 = vadd.f32 %v653, %v744
        %746 = vmatmul.bf16.gmra.mxu0 %v701
        %v747 = vpop.f32.mrf.mxu0
        %v748 = vadd.f32 %v653, %v747
        %v749 = vpop.f32.mrf.mxu0
        %v750 = vadd.f32 %v653, %v749
        %751 = vdwg.mxu0
        %v752 = vmax.f32 %v713, 0.0
        %v753 = vmax.f32 %v715, 0.0
        %v754 = vmax.f32 %v718, 0.0
        %v755 = vmax.f32 %v720, 0.0
        %v756 = vmax.f32 %v723, 0.0
        %v757 = vmax.f32 %v725, 0.0
        %v758 = vmax.f32 %v728, 0.0
        %v759 = vmax.f32 %v730, 0.0
        %v760 = vmax.f32 %v733, 0.0
        %v761 = vmax.f32 %v735, 0.0
        %v762 = vmax.f32 %v738, 0.0
        %v763 = vmax.f32 %v740, 0.0
        %v764 = vmax.f32 %v743, 0.0
        %v765 = vmax.f32 %v745, 0.0
        %v766 = vmax.f32 %v748, 0.0
        %v767 = vmax.f32 %v750, 0.0
        %v768 = vpack.c.bf16 %v753, %v752
        %v769 = vpack.c.bf16 %v755, %v754
        %v770 = vpack.c.bf16 %v757, %v756
        %v771 = vpack.c.bf16 %v759, %v758
        %v772 = vpack.c.bf16 %v761, %v760
        %v773 = vpack.c.bf16 %v763, %v762
        %v774 = vpack.c.bf16 %v765, %v764
        %v775 = vpack.c.bf16 %v767, %v766
        %v776 = vld [vmem:[%s7] sm:$0xf]
        %v777 = vld [vmem:[%s7 + $0x4] sm:$0xf]
        %v778 = vld [vmem:[%s7 + $0x8] sm:$0xf]
        %v779 = vld [vmem:[%s7 + $0xc] sm:$0xf]
        %v780 = vld [vmem:[%s7 + $0x10] sm:$0xf]
        %v781 = vld [vmem:[%s7 + $0x14] sm:$0xf]
        %v782 = vld [vmem:[%s8] sm:$0x1]
        %v784 = vperm.slane %v782, 0
        %v792 = vunpack.c.l.b16 %v776
        %v793 = vunpack.c.l.b16 %v777
        %v794 = vunpack.c.l.b16 %v778
        %v795 = vunpack.c.l.b16 %v779
        %v796 = vunpack.c.l.b16 %v780
        %v797 = vunpack.c.l.b16 %v781
        %v798 = vpack.c.b16 %v793, %v792
        %v799 = vpack.c.b16 %v795, %v794
        %v800 = vpack.c.b16 %v797, %v796
        %vm804 = vcmask 392192
        %v806 = vsel %vm804, %v768, 0
        %v809 = vsel %vm804, %v769, 0
        %v812 = vsel %vm804, %v770, 0
        %v815 = vsel %vm804, %v771, 0
        %v818 = vsel %vm804, %v772, 0
        %v821 = vsel %vm804, %v773, 0
        %v824 = vsel %vm804, %v774, 0
        %v827 = vsel %vm804, %v775, 0
        %829 = vmatpush.bf16.msra.mxu0 0
        %830 = vmatpush.bf16.msra.mxu0 0
        %831 = vmatpush.bf16.msra.mxu0 0
        %832 = vmatpush.bf16.msra.mxu0 0
        %833 = vmatpush.bf16.msra.mxu0 0
        %834 = vmatpush.bf16.msra.mxu0 %v800
        %835 = vmatpush.bf16.msra.mxu0 %v799
        %836 = vmatpush.bf16.msra.mxu0 %v798
        %837 = vmatmul.bf16.gmra.mxu0 %v806
        %v838 = vpop.f32.mrf.mxu0
        %v839 = vadd.f32 %v784, %v838
        %v840 = vpop.f32.mrf.mxu0
        %v841 = vadd.f32 %v784, %v840
        %842 = vmatmul.bf16.gmra.mxu0 %v809
        %v843 = vpop.f32.mrf.mxu0
        %v844 = vadd.f32 %v784, %v843
        %v845 = vpop.f32.mrf.mxu0
        %v846 = vadd.f32 %v784, %v845
        %847 = vmatmul.bf16.gmra.mxu0 %v812
        %v848 = vpop.f32.mrf.mxu0
        %v849 = vadd.f32 %v784, %v848
        %v850 = vpop.f32.mrf.mxu0
        %v851 = vadd.f32 %v784, %v850
        %852 = vmatmul.bf16.gmra.mxu0 %v815
        %v853 = vpop.f32.mrf.mxu0
        %v854 = vadd.f32 %v784, %v853
        %v855 = vpop.f32.mrf.mxu0
        %v856 = vadd.f32 %v784, %v855
        %857 = vmatmul.bf16.gmra.mxu0 %v818
        %v858 = vpop.f32.mrf.mxu0
        %v859 = vadd.f32 %v784, %v858
        %v860 = vpop.f32.mrf.mxu0
        %v861 = vadd.f32 %v784, %v860
        %862 = vmatmul.bf16.gmra.mxu0 %v821
        %v863 = vpop.f32.mrf.mxu0
        %v864 = vadd.f32 %v784, %v863
        %v865 = vpop.f32.mrf.mxu0
        %v866 = vadd.f32 %v784, %v865
        %867 = vmatmul.bf16.gmra.mxu0 %v824
        %v868 = vpop.f32.mrf.mxu0
        %v869 = vadd.f32 %v784, %v868
        %v870 = vpop.f32.mrf.mxu0
        %v871 = vadd.f32 %v784, %v870
        %872 = vmatmul.bf16.gmra.mxu0 %v827
        %v873 = vpop.f32.mrf.mxu0
        %v874 = vadd.f32 %v784, %v873
        %v875 = vpop.f32.mrf.mxu0
        %v876 = vadd.f32 %v784, %v875
        %877 = vdwg.mxu0
        %v878 = vmax.f32 %v839, 0.0
        %v879 = vmax.f32 %v841, 0.0
        %v880 = vmax.f32 %v844, 0.0
        %v881 = vmax.f32 %v846, 0.0
        %v882 = vmax.f32 %v849, 0.0
        %v883 = vmax.f32 %v851, 0.0
        %v884 = vmax.f32 %v854, 0.0
        %v885 = vmax.f32 %v856, 0.0
        %v886 = vmax.f32 %v859, 0.0
        %v887 = vmax.f32 %v861, 0.0
        %v888 = vmax.f32 %v864, 0.0
        %v889 = vmax.f32 %v866, 0.0
        %v890 = vmax.f32 %v869, 0.0
        %v891 = vmax.f32 %v871, 0.0
        %v892 = vmax.f32 %v874, 0.0
        %v893 = vmax.f32 %v876, 0.0
        %894 = vst [vmem:[%s326] sm:$0xff] %v878
        %895 = vst [vmem:[%s326 + $0x8] sm:$0xff] %v879
        %896 = vst [vmem:[%s326 + $0x10] sm:$0xff] %v880
        %897 = vst [vmem:[%s326 + $0x18] sm:$0xff] %v881
        %898 = vst [vmem:[%s326 + $0x20] sm:$0xff] %v882
        %899 = vst [vmem:[%s326 + $0x28] sm:$0xff] %v883
        %900 = vst [vmem:[%s326 + $0x30] sm:$0xff] %v884
        %901 = vst [vmem:[%s326 + $0x38] sm:$0xff] %v885
        %902 = vst [vmem:[%s326 + $0x40] sm:$0xff] %v886
        %903 = vst [vmem:[%s326 + $0x48] sm:$0xff] %v887
        %904 = vst [vmem:[%s326 + $0x50] sm:$0xff] %v888
        %905 = vst [vmem:[%s326 + $0x58] sm:$0xff] %v889
        %906 = vst [vmem:[%s326 + $0x60] sm:$0xff] %v890
        %907 = vst [vmem:[%s326 + $0x68] sm:$0xff] %v891
        %908 = vst [vmem:[%s326 + $0x70] sm:$0xff] %v892
        %909 = vst [vmem:[%s326 + $0x78] sm:$0xff] %v893
        %s910 = sand.u32 %s225, 1
        %s911 = scalar_lea.sflag [#allocation3], %s910
        %s912 = sand.u32 %s225, 1
        %s913 = smul.addr %s912, 128
        %s914 = scalar_lea.vmem [#allocation2], %s913
        // Predicated region
        $region57: #{tpu_custom_call.1} parent=55 // pred_check
          %p915 = pneg %p235
        $region58: #{tpu_custom_call.1} parent=55 // pred_check_branch
          %917 = sbr.rel (%p915) target = $region60
        $region59: #{tpu_custom_call.1} parent=55 // pred_region
          %s918 = smul.u32 16, %s23
          %920 = vsyncadd %s911, 0
          %s921 = smul.addr %s918, 8
          %s922 = scalar_lea.hbm %s9, %s921
          %s923 = sshll.u32 %s914, 4
          %s924 = int_to_ptr.vmem [resolvable:$true] %s923
          %s925 = sshll.u32 %s922, 4
          %s926 = int_to_ptr.hbm [resolvable:$true] %s925
          %931 = dma.vmem_to_hbm [thread:$0]  %s924, 2048, %s926, %s911, 128, 128, 8
        $region60: #{tpu_custom_call.1} parent=55 // pred_fallthru
          _
      $region56: #{tpu_custom_call.1} parent=5 // pred_fallthru
        _
      %p932 = scmp.le.s32.totalorder 2, %s18
      // Predicated region
      $region61: #{tpu_custom_call.1} parent=5 // pred_check
        %p933 = pneg %p932
      $region62: #{tpu_custom_call.1} parent=5 // pred_check_branch
        %935 = sbr.rel (%p933) target = $region64
      $region63: #{tpu_custom_call.1} parent=5 // pred_region
        %s936 = ssub.s32 %s18, 2
        // Predicated region
        $region65: #{tpu_custom_call.1} parent=63 // pred_check
          %p937 = pneg %p241
        $region66: #{tpu_custom_call.1} parent=63 // pred_check_branch
          %939 = sbr.rel (%p937) target = $region68
        $region67: #{tpu_custom_call.1} parent=63 // pred_region
          %s940 = sand.u32 %s226, 1
          %s941 = scalar_lea.sflag [#allocation3], %s940
          %s942 = sand.u32 %s226, 1
          %s943 = smul.addr %s942, 128
          %s944 = scalar_lea.vmem [#allocation2], %s943
          %946 = dma.done %s941, 2048
        $region68: #{tpu_custom_call.1} parent=63 // pred_fallthru
          _
      $region64: #{tpu_custom_call.1} parent=5 // pred_fallthru
        _
    $region6: #{tpu_custom_call.1} parent=1 // loop_footer
      %s22 = sadd.s32 1, %s18
    $region7: #{tpu_custom_call.1} parent=1 // loop_footer_branch
      %17 = sbr.rel target = $region3
    $region8: #{tpu_custom_call.1} parent=1 // loop_exit
      _
    %947 = vsyncpa [#allocation3], 1
    %s948 = scalar_lea.sflag [#allocation3], 1
    %949 = vsyncpa %s948, 1

</llo_original>
